<compile_context>
chip_gen: v6e
topology: v6e:2x2x1
jax: 0.10.0
libtpu: 0.0.40
codegen_flags: <defaults>
</compile_context>

<pallas_src>
import functools

import jax
import jax.numpy as jnp
from jax.experimental import pallas as pl
from jax.experimental.pallas import tpu as pltpu


def _ensemble_kernel(x_ref, w1c_ref, b1c_ref, w2c_ref, b2c_ref, w3c_ref,
                     b3c_ref, out_ref):
    x = x_ref[...]                                            # (TB, F) f32

    # Layer 1 fused across models: (TB, F) @ (F, M*H) -> ReLU
    h1 = jnp.dot(x, w1c_ref[...], preferred_element_type=jnp.float32)
    h1 = jnp.maximum(h1 + b1c_ref[...], 0.0)                  # (TB, M*H)

    # Layer 2 fused (block-diagonal weights keep models independent).
    h2 = jnp.dot(h1, w2c_ref[...], preferred_element_type=jnp.float32)
    h2 = jnp.maximum(h2 + b2c_ref[...], 0.0)                  # (TB, M*H)

    # Output layer fused: (TB, M*H) @ (M*H, M) -> per-model logits.
    logits = jnp.dot(h2, w3c_ref[...], preferred_element_type=jnp.float32)
    logits = logits + b3c_ref[...]                            # (TB, M)

    # Per-model sigmoid + ensemble mean in-kernel (3-lane XLU reduce is free;
    # removes the separate wrapper-side XLA mean dispatch).
    preds = jax.nn.sigmoid(logits)
    out_ref[...] = jnp.mean(preds, axis=-1, keepdims=True)    # (TB, 1)


def prepare_fused_params(params):
    """One-time layout plumbing: fuse the per-model MLPs into 3 wide matrices.

    Call once at parameter-load time; the result is reused by every forward.
    """
    w1, b1, w2, b2, w3, b3 = (params["w1"], params["b1"], params["w2"],
                              params["b2"], params["w3"], params["b3"])
    M, F, H = w1.shape
    MH = M * H

    # Layer 1: columns ordered model-major, i.e. column m*H + h.
    w1c = jnp.transpose(w1, (1, 0, 2)).reshape(F, MH)          # (F, M*H)
    b1c = b1.reshape(1, MH)                                    # (1, M*H)

    # Layer 2: block-diagonal (M*H, M*H); off-diagonal blocks are zero.
    # TODO(synk): for M*H >> 256 switch to a per-model grid axis / batched dot
    # instead of this O((M*H)^2) zero padding (VMEM + MXU waste at scale).
    eye_m = jnp.eye(M, dtype=w2.dtype)                         # (M, M)
    w2c = jnp.einsum("mn,mij->minj", eye_m, w2).reshape(MH, MH)
    b2c = b2.reshape(1, MH)                                    # (1, M*H)

    # Output layer: (M*H, M); column m holds w3[m] only in its own H-chunk.
    w3c = jnp.einsum("mn,mi->min", eye_m, w3.reshape(M, H)).reshape(MH, M)
    b3c = b3.reshape(1, M)                                     # (1, M)

    return {"w1c": w1c, "b1c": b1c, "w2c": w2c, "b2c": b2c,
            "w3c": w3c, "b3c": b3c}


@functools.partial(jax.jit, static_argnames=("tile_b",))
def ensemble_docking_classifier(x, fused, *, tile_b=1024):
    """x: (B, F) float32.  fused: output of prepare_fused_params."""
    w1c, b1c, w2c, b2c, w3c, b3c = (fused["w1c"], fused["b1c"], fused["w2c"],
                                    fused["b2c"], fused["w3c"], fused["b3c"])
    F, MH = w1c.shape
    M = w3c.shape[1]
    B = x.shape[0]

    if B <= tile_b:
        # Small batch: single invocation, no grid -> no pipeline machinery,
        # no double-buffered copies of the resident weights.
        vmem = pl.BlockSpec(memory_space=pltpu.MemorySpace.VMEM)
        return pl.pallas_call(
            _ensemble_kernel,
            out_shape=jax.ShapeDtypeStruct((B, 1), jnp.float32),
            in_specs=[vmem] * 7,
            out_specs=vmem,
        )(x, w1c, b1c, w2c, b2c, w3c, b3c)

    # Large batch: tile B on a parallel grid axis. Weight BlockSpecs use a
    # constant index_map so they stay VMEM-resident; only x / out stream.
    tb = tile_b                     # multiple of 8 (sublane constraint)
    pad = (-B) % tb
    xp = jnp.pad(x, ((0, pad), (0, 0))) if pad else x
    nb = (B + pad) // tb

    def resident(shape):
        return pl.BlockSpec(shape, lambda i: (0, 0))

    out = pl.pallas_call(
        _ensemble_kernel,
        out_shape=jax.ShapeDtypeStruct((B + pad, 1), jnp.float32),
        grid=(nb,),
        in_specs=[
            pl.BlockSpec((tb, F), lambda i: (i, 0)),   # x streams over B
            resident((F, MH)),
            resident((1, MH)),
            resident((MH, MH)),
            resident((1, MH)),
            resident((MH, M)),
            resident((1, M)),
        ],
        out_specs=pl.BlockSpec((tb, 1), lambda i: (i, 0)),
        compiler_params=pltpu.CompilerParams(
            # "parallel" B axis -> shards tiles across both TCs on v7x.
            dimension_semantics=("parallel",)),
    )(xp, w1c, b1c, w2c, b2c, w3c, b3c)
    return out[:B]


def init_params(key, n_models, n_features, hidden):
    """Deterministic synthetic parameters (PyTorch-style uniform fan-in init)."""
    keys = jax.random.split(key, 6)

    def unif(k, shape, fan_in):
        bound = 1.0 / jnp.sqrt(jnp.float32(fan_in))
        return jax.random.uniform(k, shape, jnp.float32, -bound, bound)

    return {
        "w1": unif(keys[0], (n_models, n_features, hidden), n_features),
        "b1": unif(keys[1], (n_models, 1, hidden), n_features),
        "w2": unif(keys[2], (n_models, hidden, hidden), hidden),
        "b2": unif(keys[3], (n_models, 1, hidden), hidden),
        "w3": unif(keys[4], (n_models, hidden, 1), hidden),
        "b3": unif(keys[5], (n_models, 1, 1), hidden),
    }


def reference_forward(x, params):
    """Pure-JAX reference mirroring the PyTorch ensemble forward."""
    preds = []
    M = params["w1"].shape[0]
    for m in range(M):
        h1 = jnp.maximum(x @ params["w1"][m] + params["b1"][m], 0.0)
        h2 = jnp.maximum(h1 @ params["w2"][m] + params["b2"][m], 0.0)
        logit = h2 @ params["w3"][m] + params["b3"][m]
        preds.append(jax.nn.sigmoid(logit))
    return jnp.mean(jnp.stack(preds), axis=0)


if __name__ == "__main__":
    B, F, H, M = 8, 32, 32, 3  # batch, features, hidden, ensemble size

    key = jax.random.PRNGKey(0)
    kx, kp, kx2 = jax.random.split(key, 3)
    x = jax.random.normal(kx, (B, F), dtype=jnp.float32)
    params = init_params(kp, M, F, H)

    # One-time fused-weight preparation (parameter-load time).
    fused = jax.tree_util.tree_map(jax.block_until_ready,
                                   prepare_fused_params(params))

    # Small-batch path (no grid).
    out = ensemble_docking_classifier(x, fused)
    out = jax.block_until_ready(out)
    ref = reference_forward(x, params)
    assert out.shape == (B, 1)
    assert jnp.allclose(out, ref, atol=1e-5, rtol=1e-5), "small-batch mismatch"

    # Large-batch path (B tiled on a parallel grid axis, resident weights).
    B2 = 1040
    x2 = jax.random.normal(kx2, (B2, F), dtype=jnp.float32)
    out2 = ensemble_docking_classifier(x2, fused, tile_b=512)
    out2 = jax.block_until_ready(out2)
    ref2 = reference_forward(x2, params)
    assert out2.shape == (B2, 1)
    assert jnp.allclose(out2, ref2, atol=1e-5, rtol=1e-5), "tiled-batch mismatch"

    print("KERNEL_OK")
</pallas_src>

<mosaic_0001>
module attributes {stable_mosaic.version = 11 : i64} {
  func.func @_ensemble_kernel(%arg0: memref<8x32xf32, #tpu.memory_space<vmem>>, %arg1: memref<32x96xf32, #tpu.memory_space<vmem>>, %arg2: memref<1x96xf32, #tpu.memory_space<vmem>>, %arg3: memref<96x96xf32, #tpu.memory_space<vmem>>, %arg4: memref<1x96xf32, #tpu.memory_space<vmem>>, %arg5: memref<96x3xf32, #tpu.memory_space<vmem>>, %arg6: memref<1x3xf32, #tpu.memory_space<vmem>>, %arg7: memref<8x1xf32, #tpu.memory_space<vmem>>) attributes {dimension_semantics = [], scalar_prefetch = 0 : i64, scratch_operands = 0 : i64, tpu.core_type = #tpu.core_type<tc>} {
    %c0 = arith.constant 0 : index
    %c0_0 = arith.constant 0 : index
    %0 = vector.load %arg0[%c0, %c0_0] : memref<8x32xf32, #tpu.memory_space<vmem>>, vector<8x32xf32>
    %c0_1 = arith.constant 0 : index
    %c0_2 = arith.constant 0 : index
    %1 = vector.load %arg1[%c0_1, %c0_2] : memref<32x96xf32, #tpu.memory_space<vmem>>, vector<32x96xf32>
    %cst = arith.constant dense<0.000000e+00> : vector<8x96xf32>
    %2 = tpu.matmul %0, %1, %cst {dimension_numbers = #tpu.dot_dimension_numbers<[1], [0], [0], [1], [0, 0, 1, 1], [], []>} : vector<8x32xf32>, vector<32x96xf32>, vector<8x96xf32> -> vector<8x96xf32>
    %c0_3 = arith.constant 0 : index
    %c0_4 = arith.constant 0 : index
    %3 = vector.load %arg2[%c0_3, %c0_4] : memref<1x96xf32, #tpu.memory_space<vmem>>, vector<1x96xf32>
    %4 = vector.broadcast %3 : vector<1x96xf32> to vector<8x96xf32>
    %5 = arith.addf %2, %4 : vector<8x96xf32>
    %cst_5 = arith.constant 0.000000e+00 : f32
    %6 = vector.broadcast %cst_5 : f32 to vector<8x96xf32>
    %7 = arith.maximumf %5, %6 : vector<8x96xf32>
    %c0_6 = arith.constant 0 : index
    %c0_7 = arith.constant 0 : index
    %8 = vector.load %arg3[%c0_6, %c0_7] : memref<96x96xf32, #tpu.memory_space<vmem>>, vector<96x96xf32>
    %cst_8 = arith.constant dense<0.000000e+00> : vector<8x96xf32>
    %9 = tpu.matmul %7, %8, %cst_8 {dimension_numbers = #tpu.dot_dimension_numbers<[1], [0], [0], [1], [0, 0, 1, 1], [], []>} : vector<8x96xf32>, vector<96x96xf32>, vector<8x96xf32> -> vector<8x96xf32>
    %c0_9 = arith.constant 0 : index
    %c0_10 = arith.constant 0 : index
    %10 = vector.load %arg4[%c0_9, %c0_10] : memref<1x96xf32, #tpu.memory_space<vmem>>, vector<1x96xf32>
    %11 = vector.broadcast %10 : vector<1x96xf32> to vector<8x96xf32>
    %12 = arith.addf %9, %11 : vector<8x96xf32>
    %cst_11 = arith.constant 0.000000e+00 : f32
    %13 = vector.broadcast %cst_11 : f32 to vector<8x96xf32>
    %14 = arith.maximumf %12, %13 : vector<8x96xf32>
    %c0_12 = arith.constant 0 : index
    %c0_13 = arith.constant 0 : index
    %15 = vector.load %arg5[%c0_12, %c0_13] : memref<96x3xf32, #tpu.memory_space<vmem>>, vector<96x3xf32>
    %cst_14 = arith.constant dense<0.000000e+00> : vector<8x3xf32>
    %16 = tpu.matmul %14, %15, %cst_14 {dimension_numbers = #tpu.dot_dimension_numbers<[1], [0], [0], [1], [0, 0, 1, 1], [], []>} : vector<8x96xf32>, vector<96x3xf32>, vector<8x3xf32> -> vector<8x3xf32>
    %c0_15 = arith.constant 0 : index
    %c0_16 = arith.constant 0 : index
    %17 = vector.load %arg6[%c0_15, %c0_16] : memref<1x3xf32, #tpu.memory_space<vmem>>, vector<1x3xf32>
    %18 = vector.broadcast %17 : vector<1x3xf32> to vector<8x3xf32>
    %19 = arith.addf %16, %18 : vector<8x3xf32>
    %20 = arith.negf %19 : vector<8x3xf32>
    %21 = math.exp %20 : vector<8x3xf32>
    %cst_17 = arith.constant 1.000000e+00 : f32
    %22 = vector.broadcast %cst_17 : f32 to vector<8x3xf32>
    %23 = arith.addf %22, %21 : vector<8x3xf32>
    %24 = arith.divf %22, %23 : vector<8x3xf32>
    %cst_18 = arith.constant dense<0.000000e+00> : vector<8xf32>
    %25 = vector.multi_reduction <add>, %24, %cst_18 [1] : vector<8x3xf32> to vector<8xf32>
    %26 = vector.shape_cast %25 : vector<8xf32> to vector<8x1xf32>
    %cst_19 = arith.constant 3.000000e+00 : f32
    %27 = vector.broadcast %cst_19 : f32 to vector<8x1xf32>
    %28 = arith.divf %26, %27 : vector<8x1xf32>
    %c0_20 = arith.constant 0 : index
    %c0_21 = arith.constant 0 : index
    %29 = vector.load %arg7[%c0_20, %c0_21] : memref<8x1xf32, #tpu.memory_space<vmem>>, vector<8x1xf32>
    tpu.vector_store %arg7[%c0_20, %c0_21], %28 {strides = array<i32>} : memref<8x1xf32, #tpu.memory_space<vmem>>, vector<8x1xf32>,
    return
  }
}

</mosaic_0001>

<llo_original>
// kernel: ensemble_docking_classifier.1
$region0: #{ensemble_docking_classifier.1}
  #allocation0 [shape = 'u32[]', space=smem, size = 0x4, offset = 0x4, fixed_abs, tag = 'smem constant byte address 0x4 - core index']
  #allocation1 [shape = 'u32[144,128]{1,0:T(1,128)}', space=vmem, size = 0x12000, scoped, tag = 'internal scratch']
  %s0 = inlined_call_operand.vmem [shape: f32[8,32], index: 0, kind: input, shape index: {}]
  %s1 = inlined_call_operand.hbm [shape: f32[32,96], index: 1, kind: input, shape index: {}]
  %s2 = inlined_call_operand.vmem [shape: f32[1,96], index: 2, kind: input, shape index: {}]
  %s3 = inlined_call_operand.vmem [shape: f32[96,96], index: 3, kind: input, shape index: {}]
  %s4 = inlined_call_operand.vmem [shape: f32[1,96], index: 4, kind: input, shape index: {}]
  %s5 = inlined_call_operand.vmem [shape: f32[96,3], index: 5, kind: input, shape index: {}]
  %s6 = inlined_call_operand.hbm [shape: f32[1,3], index: 6, kind: input, shape index: {}]
  %s7 = inlined_call_operand.vmem [shape: f32[8,1], index: 7, kind: output, shape index: {}]
  %s8 = sld [smem:[#allocation0]]
  $region46: #{ensemble_docking_classifier.1} parent=0
    _
  %s10 = ssub.s32 1, %s8
  %s11 = scalar_select 0, %s10, %s8
  $region1: #{ensemble_docking_classifier.1} parent=0
    #allocation2 [shape = 'u8[16384]{0}', space=vmem, size = 0x4000, scoped, tag = 'input window, operand 1, single buffered']
    #allocation3 [shape = 's32[1]{0}', space=sflag, size = 0x4, scoped, tag = 'scoped memory for ensemble_docking_classifier.1']
    #allocation4 [shape = 'u8[512]{0}', space=vmem, size = 0x400, scoped, tag = 'input window, operand 6, single buffered']
    #allocation5 [shape = 's32[1]{0}', space=sflag, size = 0x4, scoped, tag = 'scoped memory for ensemble_docking_classifier.1']
    %12 = vsyncpa [#allocation3], 0
    %13 = vsyncpa [#allocation5], 0
    // Predicated region
    $region2: #{ensemble_docking_classifier.1} parent=1 // pred_check
      _
    $region3: #{ensemble_docking_classifier.1} parent=1 // pred_check_branch
      %15 = sbr.rel (0) target = $region5
    $region4: #{ensemble_docking_classifier.1} parent=1 // pred_region
      _
    $region5: #{ensemble_docking_classifier.1} parent=1 // pred_fallthru
      _
    // Predicated region
    $region6: #{ensemble_docking_classifier.1} parent=1 // pred_check
      _
    $region7: #{ensemble_docking_classifier.1} parent=1 // pred_check_branch
      %17 = sbr.rel (0) target = $region9
    $region8: #{ensemble_docking_classifier.1} parent=1 // pred_region
      %s19 = ssub.s32 512, 512
      %20 = vsyncadd [#allocation3], %s19
      %s21 = sshll.u32 [#allocation2], 4
      %s22 = int_to_ptr.vmem [resolvable:$true] %s21
      %27 = dma.hbm_to_vmem [thread:$0]  %s1, 512, %s22, [#allocation3], 128, 128, 8
    $region9: #{ensemble_docking_classifier.1} parent=1 // pred_fallthru
      _
    // Predicated region
    $region10: #{ensemble_docking_classifier.1} parent=1 // pred_check
      _
    $region11: #{ensemble_docking_classifier.1} parent=1 // pred_check_branch
      %29 = sbr.rel (0) target = $region13
    $region12: #{ensemble_docking_classifier.1} parent=1 // pred_region
      _
    $region13: #{ensemble_docking_classifier.1} parent=1 // pred_fallthru
      _
    // Predicated region
    $region14: #{ensemble_docking_classifier.1} parent=1 // pred_check
      _
    $region15: #{ensemble_docking_classifier.1} parent=1 // pred_check_branch
      %31 = sbr.rel (0) target = $region17
    $region16: #{ensemble_docking_classifier.1} parent=1 // pred_region
      _
    $region17: #{ensemble_docking_classifier.1} parent=1 // pred_fallthru
      _
    // Predicated region
    $region18: #{ensemble_docking_classifier.1} parent=1 // pred_check
      _
    $region19: #{ensemble_docking_classifier.1} parent=1 // pred_check_branch
      %33 = sbr.rel (0) target = $region21
    $region20: #{ensemble_docking_classifier.1} parent=1 // pred_region
      _
    $region21: #{ensemble_docking_classifier.1} parent=1 // pred_fallthru
      _
    // Predicated region
    $region22: #{ensemble_docking_classifier.1} parent=1 // pred_check
      _
    $region23: #{ensemble_docking_classifier.1} parent=1 // pred_check_branch
      %35 = sbr.rel (0) target = $region25
    $region24: #{ensemble_docking_classifier.1} parent=1 // pred_region
      _
    $region25: #{ensemble_docking_classifier.1} parent=1 // pred_fallthru
      _
    // Predicated region
    $region26: #{ensemble_docking_classifier.1} parent=1 // pred_check
      _
    $region27: #{ensemble_docking_classifier.1} parent=1 // pred_check_branch
      %37 = sbr.rel (0) target = $region29
    $region28: #{ensemble_docking_classifier.1} parent=1 // pred_region
      %s39 = ssub.s32 16, 16
      %40 = vsyncadd [#allocation5], %s39
      %s42 = sshll.u32 [#allocation4], 4
      %s43 = int_to_ptr.vmem [resolvable:$true] %s42
      %45 = dma.hbm_to_vmem [thread:$0]  %s6, 16, %s43, [#allocation5]
    $region29: #{ensemble_docking_classifier.1} parent=1 // pred_fallthru
      _
    // Predicated region
    $region30: #{ensemble_docking_classifier.1} parent=1 // pred_check
      _
    $region31: #{ensemble_docking_classifier.1} parent=1 // pred_check_branch
      %47 = sbr.rel (0) target = $region33
    $region32: #{ensemble_docking_classifier.1} parent=1 // pred_region
      %48 = dma.done [#allocation3], 512
    $region33: #{ensemble_docking_classifier.1} parent=1 // pred_fallthru
      _
    // Predicated region
    $region34: #{ensemble_docking_classifier.1} parent=1 // pred_check
      _
    $region35: #{ensemble_docking_classifier.1} parent=1 // pred_check_branch
      %50 = sbr.rel (0) target = $region37
    $region36: #{ensemble_docking_classifier.1} parent=1 // pred_region
      %51 = dma.done [#allocation5], 16
    $region37: #{ensemble_docking_classifier.1} parent=1 // pred_fallthru
      _
    %v52 = vld [vmem:[%s0] sm:$0xff]
    %v53 = vld [vmem:[#allocation2] sm:$0xff]
    %v54 = vld [vmem:[#allocation2 + $0x8] sm:$0xff]
    %v55 = vld [vmem:[#allocation2 + $0x10] sm:$0xff]
    %v56 = vld [vmem:[#allocation2 + $0x18] sm:$0xff]
    %v57 = vld [vmem:[%s2] sm:$0x1]
    %v59 = vlaneseq
    %v60 = vshrl.u32 %v59, 7
    %v61 = vsub.s32 0, %v60
    %v62 = vrot.slane %v57, %v61
    %vm64 = vcmask 261120
    %v66 = vsel %vm64, %v52, 0
    %68 = vmatprep.subr.mxu0 0.0
    %69 = vmatpush1.msra.mxu0 0.0
    %70 = vmatprep.subr.mxu0 0.0
    %71 = vmatpush1.msra.mxu0 0.0
    %72 = vmatprep.subr.mxu0 0.0
    %73 = vmatpush1.msra.mxu0 0.0
    %74 = vmatprep.subr.mxu0 0.0
    %75 = vmatpush1.msra.mxu0 0.0
    %76 = vmatprep.subr.mxu0 0.0
    %77 = vmatpush1.msra.mxu0 0.0
    %78 = vmatprep.subr.mxu0 0.0
    %79 = vmatpush1.msra.mxu0 0.0
    %80 = vmatprep.subr.mxu0 0.0
    %81 = vmatpush1.msra.mxu0 0.0
    %82 = vmatprep.subr.mxu0 0.0
    %83 = vmatpush1.msra.mxu0 0.0
    %84 = vmatprep.subr.mxu0 0.0
    %85 = vmatpush1.msra.mxu0 0.0
    %86 = vmatprep.subr.mxu0 0.0
    %87 = vmatpush1.msra.mxu0 0.0
    %88 = vmatprep.subr.mxu0 0.0
    %89 = vmatpush1.msra.mxu0 0.0
    %90 = vmatprep.subr.mxu0 0.0
    %91 = vmatpush1.msra.mxu0 0.0
    %92 = vmatprep.subr.mxu0 0.0
    %93 = vmatpush1.msra.mxu0 %v56
    %94 = vmatprep.subr.mxu0 0.0
    %95 = vmatpush1.msra.mxu0 %v55
    %96 = vmatprep.subr.mxu0 0.0
    %97 = vmatpush1.msra.mxu0 %v54
    %98 = vmatprep.subr.mxu0 0.0
    %99 = vmatpush1.msra.mxu0 %v53
    %100 = vmatprep.subr.mxu0 0.0
    %101 = vmatpush2.msra.mxu0 0.0
    %102 = vmatprep.subr.mxu0 0.0
    %103 = vmatpush2.msra.mxu0 0.0
    %104 = vmatprep.subr.mxu0 0.0
    %105 = vmatpush2.msra.mxu0 0.0
    %106 = vmatprep.subr.mxu0 0.0
    %107 = vmatpush2.msra.mxu0 0.0
    %108 = vmatprep.subr.mxu0 0.0
    %109 = vmatpush2.msra.mxu0 0.0
    %110 = vmatprep.subr.mxu0 0.0
    %111 = vmatpush2.msra.mxu0 0.0
    %112 = vmatprep.subr.mxu0 0.0
    %113 = vmatpush2.msra.mxu0 0.0
    %114 = vmatprep.subr.mxu0 0.0
    %115 = vmatpush2.msra.mxu0 0.0
    %116 = vmatprep.subr.mxu0 0.0
    %117 = vmatpush2.msra.mxu0 0.0
    %118 = vmatprep.subr.mxu0 0.0
    %119 = vmatpush2.msra.mxu0 0.0
    %120 = vmatprep.subr.mxu0 0.0
    %121 = vmatpush2.msra.mxu0 0.0
    %122 = vmatprep.subr.mxu0 0.0
    %123 = vmatpush2.msra.mxu0 0.0
    %124 = vmatprep.subr.mxu0 0.0
    %125 = vmatpush2.msra.mxu0 0.0
    %126 = vmatprep.subr.mxu0 0.0
    %127 = vmatpush2.msra.mxu0 0.0
    %128 = vmatprep.subr.mxu0 0.0
    %129 = vmatpush2.msra.mxu0 0.0
    %130 = vmatprep.subr.mxu0 0.0
    %131 = vmatpush2.msra.mxu0 0.0
    %132 = vmatprep.mubr.f32.mxu0 0.0
    %133 = vmatmul.mubr.f32.gmra.mxu0 %v66
    %v134 = vpop.f32.mrf.mxu0
    %v135 = vadd.f32 %v62, %v134
    %v136 = vpop.f32.mrf.mxu0
    %137 = vdwg.mxu0
    %v138 = vmax.f32 %v135, 0.0
    %v139 = vld [vmem:[%s3] sm:$0xff]
    %v140 = vld [vmem:[%s3 + $0x8] sm:$0xff]
    %v141 = vld [vmem:[%s3 + $0x10] sm:$0xff]
    %v142 = vld [vmem:[%s3 + $0x18] sm:$0xff]
    %v143 = vld [vmem:[%s3 + $0x20] sm:$0xff]
    %v144 = vld [vmem:[%s3 + $0x28] sm:$0xff]
    %v145 = vld [vmem:[%s3 + $0x30] sm:$0xff]
    %v146 = vld [vmem:[%s3 + $0x38] sm:$0xff]
    %v147 = vld [vmem:[%s3 + $0x40] sm:$0xff]
    %v148 = vld [vmem:[%s3 + $0x48] sm:$0xff]
    %v149 = vld [vmem:[%s3 + $0x50] sm:$0xff]
    %v150 = vld [vmem:[%s3 + $0x58] sm:$0xff]
    %v151 = vld [vmem:[%s4] sm:$0x1]
    %v153 = vlaneseq
    %v154 = vshrl.u32 %v153, 7
    %v155 = vsub.s32 0, %v154
    %v156 = vrot.slane %v151, %v155
    %vm158 = vcmask 785408
    %v160 = vsel %vm158, %v138, 0
    %162 = vmatprep.subr.mxu0 0.0
    %163 = vmatpush1.msra.mxu0 0.0
    %164 = vmatprep.subr.mxu0 0.0
    %165 = vmatpush1.msra.mxu0 0.0
    %166 = vmatprep.subr.mxu0 0.0
    %167 = vmatpush1.msra.mxu0 0.0
    %168 = vmatprep.subr.mxu0 0.0
    %169 = vmatpush1.msra.mxu0 0.0
    %170 = vmatprep.subr.mxu0 0.0
    %171 = vmatpush1.msra.mxu0 %v150
    %172 = vmatprep.subr.mxu0 0.0
    %173 = vmatpush1.msra.mxu0 %v149
    %174 = vmatprep.subr.mxu0 0.0
    %175 = vmatpush1.msra.mxu0 %v148
    %176 = vmatprep.subr.mxu0 0.0
    %177 = vmatpush1.msra.mxu0 %v147
    %178 = vmatprep.subr.mxu0 0.0
    %179 = vmatpush1.msra.mxu0 %v146
    %180 = vmatprep.subr.mxu0 0.0
    %181 = vmatpush1.msra.mxu0 %v145
    %182 = vmatprep.subr.mxu0 0.0
    %183 = vmatpush1.msra.mxu0 %v144
    %184 = vmatprep.subr.mxu0 0.0
    %185 = vmatpush1.msra.mxu0 %v143
    %186 = vmatprep.subr.mxu0 0.0
    %187 = vmatpush1.msra.mxu0 %v142
    %188 = vmatprep.subr.mxu0 0.0
    %189 = vmatpush1.msra.mxu0 %v141
    %190 = vmatprep.subr.mxu0 0.0
    %191 = vmatpush1.msra.mxu0 %v140
    %192 = vmatprep.subr.mxu0 0.0
    %193 = vmatpush1.msra.mxu0 %v139
    %194 = vmatprep.subr.mxu0 0.0
    %195 = vmatpush2.msra.mxu0 0.0
    %196 = vmatprep.subr.mxu0 0.0
    %197 = vmatpush2.msra.mxu0 0.0
    %198 = vmatprep.subr.mxu0 0.0
    %199 = vmatpush2.msra.mxu0 0.0
    %200 = vmatprep.subr.mxu0 0.0
    %201 = vmatpush2.msra.mxu0 0.0
    %202 = vmatprep.subr.mxu0 0.0
    %203 = vmatpush2.msra.mxu0 0.0
    %204 = vmatprep.subr.mxu0 0.0
    %205 = vmatpush2.msra.mxu0 0.0
    %206 = vmatprep.subr.mxu0 0.0
    %207 = vmatpush2.msra.mxu0 0.0
    %208 = vmatprep.subr.mxu0 0.0
    %209 = vmatpush2.msra.mxu0 0.0
    %210 = vmatprep.subr.mxu0 0.0
    %211 = vmatpush2.msra.mxu0 0.0
    %212 = vmatprep.subr.mxu0 0.0
    %213 = vmatpush2.msra.mxu0 0.0
    %214 = vmatprep.subr.mxu0 0.0
    %215 = vmatpush2.msra.mxu0 0.0
    %216 = vmatprep.subr.mxu0 0.0
    %217 = vmatpush2.msra.mxu0 0.0
    %218 = vmatprep.subr.mxu0 0.0
    %219 = vmatpush2.msra.mxu0 0.0
    %220 = vmatprep.subr.mxu0 0.0
    %221 = vmatpush2.msra.mxu0 0.0
    %222 = vmatprep.subr.mxu0 0.0
    %223 = vmatpush2.msra.mxu0 0.0
    %224 = vmatprep.subr.mxu0 0.0
    %225 = vmatpush2.msra.mxu0 0.0
    %226 = vmatprep.mubr.f32.mxu0 0.0
    %227 = vmatmul.mubr.f32.gmra.mxu0 %v160
    %v228 = vpop.f32.mrf.mxu0
    %v229 = vadd.f32 %v156, %v228
    %v230 = vpop.f32.mrf.mxu0
    %231 = vdwg.mxu0
    %v232 = vmax.f32 %v229, 0.0
    %v233 = vld [vmem:[%s5] sm:$0xff]
    %v234 = vld [vmem:[%s5 + $0x8] sm:$0xff]
    %v235 = vld [vmem:[%s5 + $0x10] sm:$0xff]
    %v236 = vld [vmem:[%s5 + $0x18] sm:$0xff]
    %v237 = vld [vmem:[%s5 + $0x20] sm:$0xff]
    %v238 = vld [vmem:[%s5 + $0x28] sm:$0xff]
    %v239 = vld [vmem:[%s5 + $0x30] sm:$0xff]
    %v240 = vld [vmem:[%s5 + $0x38] sm:$0xff]
    %v241 = vld [vmem:[%s5 + $0x40] sm:$0xff]
    %v242 = vld [vmem:[%s5 + $0x48] sm:$0xff]
    %v243 = vld [vmem:[%s5 + $0x50] sm:$0xff]
    %v244 = vld [vmem:[%s5 + $0x58] sm:$0xff]
    %v245 = vld [vmem:[#allocation4] sm:$0x1]
    %v247 = vlaneseq
    %v248 = vshrl.u32 %v247, 7
    %v249 = vsub.s32 0, %v248
    %v250 = vrot.slane %v245, %v249
    %v253 = vsel %vm158, %v232, 0
    %255 = vmatprep.subr.mxu0 0.0
    %256 = vmatpush1.msra.mxu0 0.0
    %257 = vmatprep.subr.mxu0 0.0
    %258 = vmatpush1.msra.mxu0 0.0
    %259 = vmatprep.subr.mxu0 0.0
    %260 = vmatpush1.msra.mxu0 0.0
    %261 = vmatprep.subr.mxu0 0.0
    %262 = vmatpush1.msra.mxu0 0.0
    %263 = vmatprep.subr.mxu0 0.0
    %264 = vmatpush1.msra.mxu0 %v244
    %265 = vmatprep.subr.mxu0 0.0
    %266 = vmatpush1.msra.mxu0 %v243
    %267 = vmatprep.subr.mxu0 0.0
    %268 = vmatpush1.msra.mxu0 %v242
    %269 = vmatprep.subr.mxu0 0.0
    %270 = vmatpush1.msra.mxu0 %v241
    %271 = vmatprep.subr.mxu0 0.0
    %272 = vmatpush1.msra.mxu0 %v240
    %273 = vmatprep.subr.mxu0 0.0
    %274 = vmatpush1.msra.mxu0 %v239
    %275 = vmatprep.subr.mxu0 0.0
    %276 = vmatpush1.msra.mxu0 %v238
    %277 = vmatprep.subr.mxu0 0.0
    %278 = vmatpush1.msra.mxu0 %v237
    %279 = vmatprep.subr.mxu0 0.0
    %280 = vmatpush1.msra.mxu0 %v236
    %281 = vmatprep.subr.mxu0 0.0
    %282 = vmatpush1.msra.mxu0 %v235
    %283 = vmatprep.subr.mxu0 0.0
    %284 = vmatpush1.msra.mxu0 %v234
    %285 = vmatprep.subr.mxu0 0.0
    %286 = vmatpush1.msra.mxu0 %v233
    %287 = vmatprep.subr.mxu0 0.0
    %288 = vmatpush2.msra.mxu0 0.0
    %289 = vmatprep.subr.mxu0 0.0
    %290 = vmatpush2.msra.mxu0 0.0
    %291 = vmatprep.subr.mxu0 0.0
    %292 = vmatpush2.msra.mxu0 0.0
    %293 = vmatprep.subr.mxu0 0.0
    %294 = vmatpush2.msra.mxu0 0.0
    %295 = vmatprep.subr.mxu0 0.0
    %296 = vmatpush2.msra.mxu0 0.0
    %297 = vmatprep.subr.mxu0 0.0
    %298 = vmatpush2.msra.mxu0 0.0
    %299 = vmatprep.subr.mxu0 0.0
    %300 = vmatpush2.msra.mxu0 0.0
    %301 = vmatprep.subr.mxu0 0.0
    %302 = vmatpush2.msra.mxu0 0.0
    %303 = vmatprep.subr.mxu0 0.0
    %304 = vmatpush2.msra.mxu0 0.0
    %305 = vmatprep.subr.mxu0 0.0
    %306 = vmatpush2.msra.mxu0 0.0
    %307 = vmatprep.subr.mxu0 0.0
    %308 = vmatpush2.msra.mxu0 0.0
    %309 = vmatprep.subr.mxu0 0.0
    %310 = vmatpush2.msra.mxu0 0.0
    %311 = vmatprep.subr.mxu0 0.0
    %312 = vmatpush2.msra.mxu0 0.0
    %313 = vmatprep.subr.mxu0 0.0
    %314 = vmatpush2.msra.mxu0 0.0
    %315 = vmatprep.subr.mxu0 0.0
    %316 = vmatpush2.msra.mxu0 0.0
    %317 = vmatprep.subr.mxu0 0.0
    %318 = vmatpush2.msra.mxu0 0.0
    %319 = vmatprep.mubr.f32.mxu0 0.0
    %320 = vmatmul.mubr.f32.gmra.mxu0 %v253
    %v321 = vpop.f32.mrf.mxu0
    %v322 = vadd.f32 %v250, %v321
    %v323 = vpop.f32.mrf.mxu0
    %324 = vdwg.mxu0
    %v325 = vxor.u32 %v322, 2147483648
    %v326 = vmul.f32 %v325, 1.442695
    %v327 = vpow.pop %v326
    %v328 = vadd.f32 %v327, 1.0
    %v329 = vrcp.pop %v328
    %v330 = vmul.f32 1.0, %v329
    %vm331 = vcmask 23552
    %v332 = vsel %vm331, %v330, 0.0
    %333 = vadd.xlane.f32.xlu0 %v332
    %v334 = vpop.xlane.xlu0 %333
    %v335 = vrcp.pop 3.0
    %v336 = vmul.f32 %v334, %v335
    %vm337 = vcmask 7168
    %338 = vst.msk [vmem:[%s7] sm:$0xff] %vm337, %v336
    // Predicated region
    $region38: #{ensemble_docking_classifier.1} parent=1 // pred_check
      _
    $region39: #{ensemble_docking_classifier.1} parent=1 // pred_check_branch
      %340 = sbr.rel (0) target = $region41
    $region40: #{ensemble_docking_classifier.1} parent=1 // pred_region
      _
    $region41: #{ensemble_docking_classifier.1} parent=1 // pred_fallthru
      _
    // Predicated region
    $region42: #{ensemble_docking_classifier.1} parent=1 // pred_check
      _
    $region43: #{ensemble_docking_classifier.1} parent=1 // pred_check_branch
      %342 = sbr.rel (0) target = $region45
    $region44: #{ensemble_docking_classifier.1} parent=1 // pred_region
      _
    $region45: #{ensemble_docking_classifier.1} parent=1 // pred_fallthru
      _
    %343 = vsyncpa [#allocation3], 1
    %344 = vsyncpa [#allocation5], 1

</llo_original>
